<compile_context>
chip_gen: v5e
topology: v5e:2x2
jax: 0.10.0
libtpu: 0.0.40
codegen_flags: <defaults>
</compile_context>

<pallas_src>
import functools

import jax
import jax.numpy as jnp
from jax.experimental import pallas as pl
from jax.experimental.pallas import tpu as pltpu


# --------------------------------------------------------------------------- #
# Fused kernel: lane-packed masked-max message passing + info-rate combine
#               + L-sum + (linear -> relu -> softmax) head at finalize
# --------------------------------------------------------------------------- #
def mp_fused_kernel(ew_ref, neigh_ref, emb_ref, rate_ref, expand_ref,
                    w_ref, b_ref, out_ref, acc_ref):
    li = pl.program_id(1)
    n_l = pl.num_programs(1)
    l_tile = ew_ref.shape[0]
    nd = neigh_ref.shape[-1]          # N * D  (lane-packed neighbor width)
    d = emb_ref.shape[-1]             # D

    @pl.when(li == 0)
    def _init():
        acc_ref[...] = jnp.zeros_like(acc_ref)

    ew = ew_ref[...]                  # (l_tile, N_k) f32 (neighbor axis padded to 8)
    expand = expand_ref[...]          # (N_k, N*D)    f32 0/1 block-expansion matrix

    # Expand edge weights and the zero-edge penalty to the packed N*D lane layout on
    # the otherwise-idle MXU (no per-neighbor 1->D broadcasts, no full-width select).
    ew_x = jnp.dot(ew, expand, preferred_element_type=jnp.float32)        # (l_tile, N*D)
    pen = jnp.where(ew == 0.0, jnp.float32(-1e18), jnp.float32(0.0))      # narrow (l_tile, N_k)
    pen_x = jnp.dot(pen, expand, preferred_element_type=jnp.float32)      # (l_tile, N*D)

    # t = edge_weight * neighbor + penalty
    # NOTE: differs from masked_fill(t == 0, -1e18) only if a neighbor feature is
    # exactly 0.0 under a nonzero edge weight (measure-zero for real embeddings).
    t = ew_x * neigh_ref[...] + pen_x                                     # (l_tile, N*D)

    # Masked max over the neighbor axis: ceil(log2(N)) circular lane rolls (XLU).
    shift = d
    while shift < nd:
        t = jnp.maximum(t, pltpu.roll(t, shift=shift, axis=1))
        shift *= 2
    m_max = t[:, :d]                                                      # (l_tile, D)

    # TODO(synk): dropout_rate=0 -> dropout is identity; nonzero dropout not implemented.
    rate = rate_ref[...]                                                  # (l_tile, 1), pre-masked
    combined = (1.0 - rate) * m_max + rate * emb_ref[...]                 # (l_tile, D)

    # Per-step: plain cross-vreg adds into the (8, D) scratch (8-row slabs are exact
    # vreg slabs); the XLU sublane reduce + output store happen only at finalize.
    part = combined[0:8, :]
    for j in range(1, l_tile // 8):
        part = part + combined[j * 8:(j + 1) * 8, :]
    acc_ref[...] += part

    # Finalize (once per batch row): sum -> linear -> relu -> softmax (fused head).
    @pl.when(li == n_l - 1)
    def _head():
        # matmul-then-sum == sum-then-matmul; keeps the MXU operand M=8 (native tile).
        xw = jnp.dot(acc_ref[...], w_ref[...], preferred_element_type=jnp.float32)  # (8, O)
        x = jnp.sum(xw, axis=0, keepdims=True) + b_ref[...]                          # (1, O)
        x = jnp.maximum(x, 0.0)
        x = x - jnp.max(x, axis=1, keepdims=True)
        e = jnp.exp(x)
        # exact normalization (approx reciprocal avoided per correctness review)
        out_ref[...] = e / jnp.sum(e, axis=1, keepdims=True)


# --------------------------------------------------------------------------- #
# Wrapper
# --------------------------------------------------------------------------- #
def _vmem_limit_bytes():
    """Scoped-VMEM limit derived from the chip's physical VMEM
    (v5e/v6e: 128 MiB -> 96 MiB, v7x: 64 MiB -> 48 MiB)."""
    try:
        cap = int(pltpu.get_tpu_info().vmem_capacity_bytes)
    except Exception:
        cap = 64 * 1024 * 1024          # conservative (v7x-sized) fallback
    return max(32 * 1024 * 1024, min(96 * 1024 * 1024, (cap * 3) // 4))


def _choose_l_tile(L, packed_nd, n_k, D, vmem_limit_bytes):
    """Largest multiple-of-8 L tile whose double-buffered per-step f32 inputs fit in
    ~1/4 of the VMEM limit (rest: pipeline overheads, constants, scratch, output)."""
    lanes, itemsize = 128, 4
    budget = max(2 * 1024 * 1024, vmem_limit_bytes // 4)

    def lane_pad(n):
        return -(-n // lanes) * lanes

    per_row = 2 * itemsize * (lane_pad(packed_nd) + lane_pad(n_k) + lane_pad(D) + lanes)
    max_rows = max(8, (budget // per_row) // 8 * 8)
    return int(min(max_rows, -(-L // 8) * 8))


def message_passing_forward(node_sets, embedded_node, edge_weight,
                            embedded_neighbor_node, information_rate, w, b,
                            *, padding_idx=1):
    B, L, N, D = embedded_neighbor_node.shape
    O = w.shape[1]

    # Gather + padding-mask the information rate in the wrapper (tiny, f32).
    rate = information_rate[node_sets]                                    # (B, L, 1)
    rate = jnp.where((node_sets == padding_idx)[..., None],
                     jnp.float32(1.0), rate).astype(jnp.float32)

    # Lane-pack neighbors: (B, L, N, D) -> (B, L, N*D).  Contiguous reshape: no
    # transpose, no dtype cast — the kernel reads f32 straight from HBM.
    neigh = embedded_neighbor_node.reshape(B, L, N * D)
    emb = embedded_node.astype(jnp.float32)
    ew = edge_weight.astype(jnp.float32)

    # Pad the (tiny) neighbor axis of edge_weight to a sublane-aligned contraction dim
    # for the MXU expansion matmul; zero rows in `expand` keep the padding inert.
    n_k = -(-N // 8) * 8
    if n_k != N:
        ew = jnp.pad(ew, ((0, 0), (0, 0), (0, n_k - N)))
    expand = jnp.repeat(jnp.eye(N, dtype=jnp.float32), D, axis=1)         # (N, N*D)
    if n_k != N:
        expand = jnp.pad(expand, ((0, n_k - N), (0, 0)))                  # (N_k, N*D)

    vmem_limit = _vmem_limit_bytes()
    l_tile = _choose_l_tile(L, N * D, n_k, D, vmem_limit)

    # Pad L so the tile always divides it: padded rows (ew=0, emb=0, rate=1)
    # contribute exactly 0 to the per-batch sum.
    L_pad = -(-L // l_tile) * l_tile
    if L_pad != L:
        p = L_pad - L
        ew = jnp.pad(ew, ((0, 0), (0, p), (0, 0)))
        neigh = jnp.pad(neigh, ((0, 0), (0, p), (0, 0)))
        emb = jnp.pad(emb, ((0, 0), (0, p), (0, 0)))
        rate = jnp.pad(rate, ((0, 0), (0, p), (0, 0)), constant_values=1.0)
    n_l = L_pad // l_tile

    # TODO(synk): on v7x with B == 1, add a second "parallel" grid axis that splits the
    # L reduction into per-core partial sums (head applied to the combined sum) so both
    # TensorCores are busy; not needed for B >= 2.
    out = pl.pallas_call(
        mp_fused_kernel,
        out_shape=jax.ShapeDtypeStruct((B, 1, O), jnp.float32),
        grid=(B, n_l),
        in_specs=[
            pl.BlockSpec((None, l_tile, n_k), lambda bi, li: (bi, li, 0)),      # edge weights
            # TODO(synk): if a v5e trace shows exposed DMA, add pipeline_mode=pl.Buffered(3)
            # on the neighbor spec below (and account for the 3rd buffer in the budget).
            pl.BlockSpec((None, l_tile, N * D), lambda bi, li: (bi, li, 0)),    # packed neighbors
            pl.BlockSpec((None, l_tile, D), lambda bi, li: (bi, li, 0)),        # node embeddings
            pl.BlockSpec((None, l_tile, 1), lambda bi, li: (bi, li, 0)),        # info rate
            pl.BlockSpec((n_k, N * D), lambda bi, li: (0, 0)),                  # 0/1 expansion
            pl.BlockSpec((D, O), lambda bi, li: (0, 0)),                        # linear weight
            pl.BlockSpec((1, O), lambda bi, li: (0, 0)),                        # linear bias
        ],
        out_specs=pl.BlockSpec((None, 1, O), lambda bi, li: (bi, 0, 0)),
        scratch_shapes=[pltpu.VMEM((8, D), jnp.float32)],
        compiler_params=pltpu.CompilerParams(
            dimension_semantics=("parallel", "arbitrary"),
            vmem_limit_bytes=vmem_limit,
        ),
    )(ew, neigh, emb, rate, expand,
      w.astype(jnp.float32), b.reshape(1, O).astype(jnp.float32))

    return out.reshape(B, O)


if __name__ == "__main__":
    key = jax.random.PRNGKey(0)
    B, L, N, D, O = 2, 8, 4, 32, 16      # batch, seq(nodes), neighbors, input_size, out_size
    vertice_count = 100
    padding_idx = 1

    k1, k2, k3, k4, k5, k6, k7 = jax.random.split(key, 7)
    node_sets = jax.random.randint(k1, (B, L), 0, vertice_count, dtype=jnp.int32)
    node_sets = node_sets.at[:, -2:].set(padding_idx)            # some padding positions
    embedded_node = jax.random.normal(k2, (B, L, D), dtype=jnp.float32)
    edge_weight = jax.random.uniform(k3, (B, L, N), dtype=jnp.float32)
    edge_weight = edge_weight * (jax.random.uniform(k4, (B, L, N)) > 0.3).astype(jnp.float32)
    # guarantee >= 1 nonzero edge per node so the -1e18 "all edges masked" case (which
    # the reference also produces, but is numerically fragile) never enters the sum.
    edge_weight = edge_weight.at[:, :, 0].set(jnp.maximum(edge_weight[:, :, 0], 0.25))
    embedded_neighbor_node = jax.random.normal(k5, (B, L, N, D), dtype=jnp.float32)

    # parameters (per __init__): information_rate ~ U[0,1) of shape (vertice_count, 1);
    # nn.Linear(D, O): W = weight.T of shape (D, O), bias (O,)
    information_rate = jax.random.uniform(k6, (vertice_count, 1), dtype=jnp.float32)
    bound = 1.0 / float(jnp.sqrt(jnp.float32(D)))
    kw, kb = jax.random.split(k7)
    w = jax.random.uniform(kw, (D, O), minval=-bound, maxval=bound, dtype=jnp.float32)
    b = jax.random.uniform(kb, (O,), minval=-bound, maxval=bound, dtype=jnp.float32)

    fwd = jax.jit(functools.partial(message_passing_forward, padding_idx=padding_idx))
    y = fwd(node_sets, embedded_node, edge_weight, embedded_neighbor_node,
            information_rate, w, b)
    jax.block_until_ready(y)

    # Pure-JAX f32 reference with the original masked_fill(t == 0) semantics (the
    # kernel's edge-weight-only penalty only differs if a neighbor feature is exactly
    # 0.0 under a nonzero edge weight — impossible for these continuous random inputs).
    tmp = edge_weight[..., None] * embedded_neighbor_node                 # (B, L, N, D)
    tmp = jnp.where(tmp == 0.0, -1e18, tmp)
    M_ref = tmp.max(axis=2)                                               # (B, L, D)
    rate_ref = information_rate[node_sets]                                # (B, L, 1)
    rate_ref = jnp.where((node_sets == padding_idx)[..., None], 1.0, rate_ref)
    comb_ref = (1.0 - rate_ref) * M_ref + rate_ref * embedded_node
    s_ref = comb_ref.sum(axis=1)                                          # (B, D)
    x_ref = jax.nn.relu(s_ref @ w + b)
    y_ref = jax.nn.softmax(x_ref, axis=1)

    # Tolerance note: with DEFAULT matmul precision the TPU may bf16-round matmul
    # operands in either the kernel or the XLA reference head; everything else is f32.
    assert jnp.allclose(y, y_ref, atol=2e-3, rtol=2e-2), (y, y_ref)

    print("KERNEL_OK")
</pallas_src>

<mosaic_0001>
module attributes {stable_mosaic.version = 11 : i64} {
  func.func @mp_fused_kernel(%arg0: i32, %arg1: i32, %arg2: memref<1x8x8xf32, #tpu.memory_space<vmem>>, %arg3: memref<1x8x128xf32, #tpu.memory_space<vmem>>, %arg4: memref<1x8x32xf32, #tpu.memory_space<vmem>>, %arg5: memref<1x8x1xf32, #tpu.memory_space<vmem>>, %arg6: memref<8x128xf32, #tpu.memory_space<vmem>>, %arg7: memref<32x16xf32, #tpu.memory_space<vmem>>, %arg8: memref<1x16xf32, #tpu.memory_space<vmem>>, %arg9: memref<1x1x16xf32, #tpu.memory_space<vmem>>, %arg10: memref<8x32xf32, #tpu.memory_space<vmem>>) attributes {dimension_semantics = [#tpu.dimension_semantics<parallel>, #tpu.dimension_semantics<arbitrary>], iteration_bounds = array<i64: 2, 1>, scalar_prefetch = 0 : i64, scratch_operands = 1 : i64, tpu.core_type = #tpu.core_type<tc>, window_params = [{transform_indices = @transform_0, window_bounds = array<i64: 1, 8, 8>}, {transform_indices = @transform_1, window_bounds = array<i64: 1, 8, 128>}, {transform_indices = @transform_2, window_bounds = array<i64: 1, 8, 32>}, {transform_indices = @transform_3, window_bounds = array<i64: 1, 8, 1>}, {pipeline_mode = #tpu.pipeline_mode<synchronous>, transform_indices = @transform_4, window_bounds = array<i64: 8, 128>}, {pipeline_mode = #tpu.pipeline_mode<synchronous>, transform_indices = @transform_5, window_bounds = array<i64: 32, 16>}, {pipeline_mode = #tpu.pipeline_mode<synchronous>, transform_indices = @transform_6, window_bounds = array<i64: 1, 16>}, {transform_indices = @transform_7, window_bounds = array<i64: 1, 1, 16>}]} {
    %c0_i32 = arith.constant 0 : i32
    %0 = arith.cmpi eq, %arg1, %c0_i32 : i32
    %1 = arith.extui %0 : i1 to i32
    %c0_i32_0 = arith.constant 0 : i32
    %2 = arith.cmpi ne, %1, %c0_i32_0 : i32
    scf.if %2 {
      %cst_25 = arith.constant 0.000000e+00 : f32
      %39 = vector.broadcast %cst_25 : f32 to vector<8x32xf32>
      %c0_26 = arith.constant 0 : index
      %c0_27 = arith.constant 0 : index
      %40 = vector.load %arg10[%c0_26, %c0_27] : memref<8x32xf32, #tpu.memory_space<vmem>>, vector<8x32xf32>
      tpu.vector_store %arg10[%c0_26, %c0_27], %39 {strides = array<i32>} : memref<8x32xf32, #tpu.memory_space<vmem>>, vector<8x32xf32>,
    } else {
    }
    %c0 = arith.constant 0 : index
    %c0_1 = arith.constant 0 : index
    %c0_2 = arith.constant 0 : index
    %3 = vector.load %arg2[%c0, %c0_1, %c0_2] : memref<1x8x8xf32, #tpu.memory_space<vmem>>, vector<1x8x8xf32>
    %4 = vector.shape_cast %3 : vector<1x8x8xf32> to vector<8x8xf32>
    %c0_3 = arith.constant 0 : index
    %c0_4 = arith.constant 0 : index
    %5 = vector.load %arg6[%c0_3, %c0_4] : memref<8x128xf32, #tpu.memory_space<vmem>>, vector<8x128xf32>
    %cst = arith.constant dense<0.000000e+00> : vector<8x128xf32>
    %6 = tpu.matmul %4, %5, %cst {dimension_numbers = #tpu.dot_dimension_numbers<[1], [0], [0], [1], [0, 0, 1, 1], [], []>} : vector<8x8xf32>, vector<8x128xf32>, vector<8x128xf32> -> vector<8x128xf32>
    %cst_5 = arith.constant 0.000000e+00 : f32
    %7 = vector.broadcast %cst_5 : f32 to vector<8x8xf32>
    %8 = arith.cmpf oeq, %4, %7 : vector<8x8xf32>
    %cst_6 = arith.constant -9.99999984E+17 : f32
    %cst_7 = arith.constant 0.000000e+00 : f32
    %9 = vector.broadcast %cst_6 : f32 to vector<8x8xf32>
    %10 = vector.broadcast %cst_7 : f32 to vector<8x8xf32>
    %11 = arith.select %8, %9, %10 : vector<8x8xi1>, vector<8x8xf32>
    %cst_8 = arith.constant dense<0.000000e+00> : vector<8x128xf32>
    %12 = tpu.matmul %11, %5, %cst_8 {dimension_numbers = #tpu.dot_dimension_numbers<[1], [0], [0], [1], [0, 0, 1, 1], [], []>} : vector<8x8xf32>, vector<8x128xf32>, vector<8x128xf32> -> vector<8x128xf32>
    %c0_9 = arith.constant 0 : index
    %c0_10 = arith.constant 0 : index
    %c0_11 = arith.constant 0 : index
    %13 = vector.load %arg3[%c0_9, %c0_10, %c0_11] : memref<1x8x128xf32, #tpu.memory_space<vmem>>, vector<1x8x128xf32>
    %14 = vector.shape_cast %13 : vector<1x8x128xf32> to vector<8x128xf32>
    %15 = arith.mulf %6, %14 : vector<8x128xf32>
    %16 = arith.addf %15, %12 : vector<8x128xf32>
    %c32_i32 = arith.constant 32 : i32
    %17 = tpu.dynamic_rotate %16 by %c32_i32 dim 1 : vector<8x128xf32>, i32 -> vector<8x128xf32>
    %18 = arith.maximumf %16, %17 : vector<8x128xf32>
    %c64_i32 = arith.constant 64 : i32
    %19 = tpu.dynamic_rotate %18 by %c64_i32 dim 1 : vector<8x128xf32>, i32 -> vector<8x128xf32>
    %20 = arith.maximumf %18, %19 : vector<8x128xf32>
    %21 = vector.extract_strided_slice %20 {offsets = [0, 0], sizes = [8, 32], strides = [1, 1]} : vector<8x128xf32> to vector<8x32xf32>
    %c0_12 = arith.constant 0 : index
    %c0_13 = arith.constant 0 : index
    %c0_14 = arith.constant 0 : index
    %22 = vector.load %arg5[%c0_12, %c0_13, %c0_14] : memref<1x8x1xf32, #tpu.memory_space<vmem>>, vector<1x8x1xf32>
    %23 = vector.shape_cast %22 : vector<1x8x1xf32> to vector<8x1xf32>
    %cst_15 = arith.constant 1.000000e+00 : f32
    %24 = vector.broadcast %cst_15 : f32 to vector<8x1xf32>
    %25 = arith.subf %24, %23 : vector<8x1xf32>
    %26 = vector.broadcast %25 : vector<8x1xf32> to vector<8x32xf32>
    %27 = arith.mulf %26, %21 : vector<8x32xf32>
    %c0_16 = arith.constant 0 : index
    %c0_17 = arith.constant 0 : index
    %c0_18 = arith.constant 0 : index
    %28 = vector.load %arg4[%c0_16, %c0_17, %c0_18] : memref<1x8x32xf32, #tpu.memory_space<vmem>>, vector<1x8x32xf32>
    %29 = vector.shape_cast %28 : vector<1x8x32xf32> to vector<8x32xf32>
    %30 = vector.broadcast %23 : vector<8x1xf32> to vector<8x32xf32>
    %31 = arith.mulf %30, %29 : vector<8x32xf32>
    %32 = arith.addf %27, %31 : vector<8x32xf32>
    %c0_19 = arith.constant 0 : index
    %c0_20 = arith.constant 0 : index
    %33 = vector.load %arg10[%c0_19, %c0_20] : memref<8x32xf32, #tpu.memory_space<vmem>>, vector<8x32xf32>
    %34 = arith.addf %33, %32 : vector<8x32xf32>
    %c0_21 = arith.constant 0 : index
    %c0_22 = arith.constant 0 : index
    %35 = vector.load %arg10[%c0_21, %c0_22] : memref<8x32xf32, #tpu.memory_space<vmem>>, vector<8x32xf32>
    tpu.vector_store %arg10[%c0_21, %c0_22], %34 {strides = array<i32>} : memref<8x32xf32, #tpu.memory_space<vmem>>, vector<8x32xf32>,
    %c0_i32_23 = arith.constant 0 : i32
    %36 = arith.cmpi eq, %arg1, %c0_i32_23 : i32
    %37 = arith.extui %36 : i1 to i32
    %c0_i32_24 = arith.constant 0 : i32
    %38 = arith.cmpi ne, %37, %c0_i32_24 : i32
    scf.if %38 {
      %c0_25 = arith.constant 0 : index
      %c0_26 = arith.constant 0 : index
      %39 = vector.load %arg10[%c0_25, %c0_26] : memref<8x32xf32, #tpu.memory_space<vmem>>, vector<8x32xf32>
      %c0_27 = arith.constant 0 : index
      %c0_28 = arith.constant 0 : index
      %40 = vector.load %arg7[%c0_27, %c0_28] : memref<32x16xf32, #tpu.memory_space<vmem>>, vector<32x16xf32>
      %cst_29 = arith.constant dense<0.000000e+00> : vector<8x16xf32>
      %41 = tpu.matmul %39, %40, %cst_29 {dimension_numbers = #tpu.dot_dimension_numbers<[1], [0], [0], [1], [0, 0, 1, 1], [], []>} : vector<8x32xf32>, vector<32x16xf32>, vector<8x16xf32> -> vector<8x16xf32>
      %cst_30 = arith.constant dense<0.000000e+00> : vector<16xf32>
      %42 = vector.multi_reduction <add>, %41, %cst_30 [0] : vector<8x16xf32> to vector<16xf32>
      %43 = vector.shape_cast %42 : vector<16xf32> to vector<1x16xf32>
      %c0_31 = arith.constant 0 : index
      %c0_32 = arith.constant 0 : index
      %44 = vector.load %arg8[%c0_31, %c0_32] : memref<1x16xf32, #tpu.memory_space<vmem>>, vector<1x16xf32>
      %45 = arith.addf %43, %44 : vector<1x16xf32>
      %cst_33 = arith.constant 0.000000e+00 : f32
      %46 = vector.broadcast %cst_33 : f32 to vector<1x16xf32>
      %47 = arith.maximumf %45, %46 : vector<1x16xf32>
      %cst_34 = arith.constant dense<0xFF800000> : vector<1xf32>
      %48 = vector.multi_reduction <maximumf>, %47, %cst_34 [1] : vector<1x16xf32> to vector<1xf32>
      %49 = vector.shape_cast %48 : vector<1xf32> to vector<1x1xf32>
      %50 = vector.broadcast %49 : vector<1x1xf32> to vector<1x16xf32>
      %51 = arith.subf %47, %50 : vector<1x16xf32>
      %52 = math.exp %51 : vector<1x16xf32>
      %cst_35 = arith.constant dense<0.000000e+00> : vector<1xf32>
      %53 = vector.multi_reduction <add>, %52, %cst_35 [1] : vector<1x16xf32> to vector<1xf32>
      %54 = vector.shape_cast %53 : vector<1xf32> to vector<1x1xf32>
      %55 = vector.broadcast %54 : vector<1x1xf32> to vector<1x16xf32>
      %56 = arith.divf %52, %55 : vector<1x16xf32>
      %c0_36 = arith.constant 0 : index
      %c0_37 = arith.constant 0 : index
      %c0_38 = arith.constant 0 : index
      %57 = vector.load %arg9[%c0_36, %c0_37, %c0_38] : memref<1x1x16xf32, #tpu.memory_space<vmem>>, vector<1x1x16xf32>
      %58 = vector.shape_cast %57 : vector<1x1x16xf32> to vector<1x16xf32>
      %59 = vector.shape_cast %56 : vector<1x16xf32> to vector<1x1x16xf32>
      tpu.vector_store %arg9[%c0_36, %c0_37, %c0_38], %59 {strides = array<i32>} : memref<1x1x16xf32, #tpu.memory_space<vmem>>, vector<1x1x16xf32>,
    } else {
    }
    return
  }
  func.func @transform_0(%arg0: i32, %arg1: i32) -> (i32, i32, i32) {
    %c0_i32 = arith.constant 0 : i32
    %c0_i32_0 = arith.constant 0 : i32
    return %arg0, %arg1, %c0_i32 : i32, i32, i32
  }
  func.func @transform_1(%arg0: i32, %arg1: i32) -> (i32, i32, i32) {
    %c0_i32 = arith.constant 0 : i32
    %c0_i32_0 = arith.constant 0 : i32
    return %arg0, %arg1, %c0_i32 : i32, i32, i32
  }
  func.func @transform_2(%arg0: i32, %arg1: i32) -> (i32, i32, i32) {
    %c0_i32 = arith.constant 0 : i32
    %c0_i32_0 = arith.constant 0 : i32
    return %arg0, %arg1, %c0_i32 : i32, i32, i32
  }
  func.func @transform_3(%arg0: i32, %arg1: i32) -> (i32, i32, i32) {
    %c0_i32 = arith.constant 0 : i32
    %c0_i32_0 = arith.constant 0 : i32
    return %arg0, %arg1, %c0_i32 : i32, i32, i32
  }
  func.func @transform_4(%arg0: i32, %arg1: i32) -> (i32, i32) {
    %c0_i32 = arith.constant 0 : i32
    %c0_i32_0 = arith.constant 0 : i32
    %c0_i32_1 = arith.constant 0 : i32
    return %c0_i32, %c0_i32_0 : i32, i32
  }
  func.func @transform_5(%arg0: i32, %arg1: i32) -> (i32, i32) {
    %c0_i32 = arith.constant 0 : i32
    %c0_i32_0 = arith.constant 0 : i32
    %c0_i32_1 = arith.constant 0 : i32
    return %c0_i32, %c0_i32_0 : i32, i32
  }
  func.func @transform_6(%arg0: i32, %arg1: i32) -> (i32, i32) {
    %c0_i32 = arith.constant 0 : i32
    %c0_i32_0 = arith.constant 0 : i32
    %c0_i32_1 = arith.constant 0 : i32
    return %c0_i32, %c0_i32_0 : i32, i32
  }
  func.func @transform_7(%arg0: i32, %arg1: i32) -> (i32, i32, i32) {
    %c0_i32 = arith.constant 0 : i32
    %c0_i32_0 = arith.constant 0 : i32
    %c0_i32_1 = arith.constant 0 : i32
    return %arg0, %c0_i32, %c0_i32_0 : i32, i32, i32
  }
}

</mosaic_0001>

<llo_original>
// kernel: message_passing_forward.1
$region0: #{message_passing_forward.1}
  #allocation0 [shape = 'u32[]', space=smem, size = 0x4, offset = 0x4, fixed_abs, tag = 'smem constant byte address 0x4 - core index']
  #allocation1 [shape = 'u32[72,128]{1,0:T(1,128)}', space=vmem, size = 0x9000, scoped, tag = 'internal scratch']
  #allocation2 [shape = 'f32[8,32]{1,0:T(8,128)}', space=vmem, size = 0x1000, scoped, tag = 'scratch operand']
  %s0 = inlined_call_operand.vmem [shape: f32[2,8,8], index: 0, kind: input, shape index: {}]
  %s1 = inlined_call_operand.vmem [shape: f32[2,8,128], index: 1, kind: input, shape index: {}]
  %s2 = inlined_call_operand.vmem [shape: f32[2,8,32], index: 2, kind: input, shape index: {}]
  %s3 = inlined_call_operand.vmem [shape: f32[2,8,1], index: 3, kind: input, shape index: {}]
  %s4 = inlined_call_operand.vmem [shape: f32[8,128], index: 4, kind: input, shape index: {}]
  %s5 = inlined_call_operand.vmem [shape: f32[32,16], index: 5, kind: input, shape index: {}]
  %s6 = inlined_call_operand.vmem [shape: f32[1,16], index: 6, kind: input, shape index: {}]
  %s7 = inlined_call_operand.hbm [shape: f32[2,1,16], index: 7, kind: output, shape index: {}]
  %s8 = sld [smem:[#allocation0]]
  $region69: #{message_passing_forward.1} parent=0
    _
  %s10 = ssub.s32 1, %s8
  %s11 = scalar_select 0, %s10, %s8
  $region1: #{message_passing_forward.1} parent=0
    #allocation3 [shape = 'u8[1024]{0}', space=vmem, size = 0x400, scoped, tag = 'output window, operand 0']
    #allocation4 [shape = 's32[2]{0}', space=sflag, size = 0x8, scoped, tag = 'scoped memory for message_passing_forward.1']
    %12 = vsyncpa [#allocation4], 0
    %s13 = scalar_lea.sflag [#allocation4], 1
    %14 = vsyncpa %s13, 0
    loop: start=0, step=1, limit=4
    $region2: #{message_passing_forward.1} parent=1 // loop_pre_header
      _
    $region3: #{message_passing_forward.1} parent=1 // loop_header
      %s16 = sphi 0, %s20
      %p17 = scmp.ge.s32.totalorder %s16, 4
      %s23 = sphi 0, %s35
      %s24 = sphi 0, %s31
      %s25 = sphi 0, %s23
      %s26 = sphi 0, %s24
      %s27 = sphi 0, %s25
      %s28 = sphi 0, %s26
      %s40 = sphi 0, %s42
      %s43 = sphi 0, %s40
      %s44 = sphi 0, %s43
      %s60 = sphi 0, %s44
      %s68 = sphi 0, %s70
      %s71 = sphi 0, %s68
      %s72 = sphi 0, %s71
      %s88 = sphi 0, %s72
      %s96 = sphi 0, %s98
      %s99 = sphi 0, %s96
      %s100 = sphi 0, %s99
      %s116 = sphi 0, %s100
      %s124 = sphi 0, %s126
      %s127 = sphi 0, %s124
      %s128 = sphi 0, %s127
      %s144 = sphi 0, %s128
      %s148 = sphi 0, %s148
      %s150 = sphi 0, %s148
      %s151 = sphi 0, %s150
      %s165 = sphi 0, %s151
      %s169 = sphi 0, %s169
      %s171 = sphi 0, %s169
      %s172 = sphi 0, %s171
      %s186 = sphi 0, %s172
      %s190 = sphi 0, %s190
      %s192 = sphi 0, %s190
      %s193 = sphi 0, %s192
      %s207 = sphi 0, %s193
      %s213 = sphi 0, %s215
      %s216 = sphi 0, %s213
      %s217 = sphi 0, %s216
      %s233 = sphi 0, %s217
    $region4: #{message_passing_forward.1} parent=1 // loop_header_branch
      %19 = sbr.rel (%p17) target = $region8
    $region5: #{message_passing_forward.1} parent=1 // loop_body
      %s21 = ssub.s32 %s16, 1
      %s22 = ssub.s32 %s16, 2
      %s29 = sadd.s32 1, %s24
      %p30 = scmp.ge.s32.totalorder %s29, 1
      %s31 = scalar_select %p30, 0, %s29
      %s32 = sadd.s32 1, %s23
      %s33 = scalar_select %p30, %s32, %s23
      %p34 = scmp.ge.s32.totalorder %s33, 2
      %s35 = scalar_select %p34, 0, %s33
      %s36 = ssub.s32 %s23, %s35
      %s37 = ssub.s32 %s24, %s31
      %s38 = sor.u32 %s36, %s37
      %p39 = scmp.eq.s32.totalorder %s38, 0
      %s41 = sadd.s32 %s40, 1
      %s42 = scalar_select %p39, %s40, %s41
      %p45 = pneg %p39
      %p46 = scmp.eq.s32.totalorder %s16, 1
      %p47 = por %p45, %p46
      %p48 = scmp.ne.s32.totalorder %s40, %s43
      %p49 = scmp.eq.s32.totalorder %s16, 0
      %p50 = por %p48, %p49
      %p51 = scmp.ne.s32.totalorder %s40, %s43
      %p52 = scmp.eq.s32.totalorder %s21, 1
      %p53 = por %p51, %p52
      %p54 = scmp.ne.s32.totalorder %s43, %s44
      %p55 = scmp.eq.s32.totalorder %s21, 0
      %p56 = por %p54, %p55
      %p57 = scmp.ne.s32.totalorder %s43, %s44
      %p58 = scmp.eq.s32.totalorder %s22, 1
      %p59 = por %p57, %p58
      %p61 = scmp.ne.s32.totalorder %s44, %s60
      %p62 = scmp.eq.s32.totalorder %s22, 0
      %p63 = por %p61, %p62
      %s64 = ssub.s32 %s23, %s35
      %s65 = ssub.s32 %s24, %s31
      %s66 = sor.u32 %s64, %s65
      %p67 = scmp.eq.s32.totalorder %s66, 0
      %s69 = sadd.s32 %s68, 1
      %s70 = scalar_select %p67, %s68, %s69
      %p73 = pneg %p67
      %p74 = scmp.eq.s32.totalorder %s16, 1
      %p75 = por %p73, %p74
      %p76 = scmp.ne.s32.totalorder %s68, %s71
      %p77 = scmp.eq.s32.totalorder %s16, 0
      %p78 = por %p76, %p77
      %p79 = scmp.ne.s32.totalorder %s68, %s71
      %p80 = scmp.eq.s32.totalorder %s21, 1
      %p81 = por %p79, %p80
      %p82 = scmp.ne.s32.totalorder %s71, %s72
      %p83 = scmp.eq.s32.totalorder %s21, 0
      %p84 = por %p82, %p83
      %p85 = scmp.ne.s32.totalorder %s71, %s72
      %p86 = scmp.eq.s32.totalorder %s22, 1
      %p87 = por %p85, %p86
      %p89 = scmp.ne.s32.totalorder %s72, %s88
      %p90 = scmp.eq.s32.totalorder %s22, 0
      %p91 = por %p89, %p90
      %s92 = ssub.s32 %s23, %s35
      %s93 = ssub.s32 %s24, %s31
      %s94 = sor.u32 %s92, %s93
      %p95 = scmp.eq.s32.totalorder %s94, 0
      %s97 = sadd.s32 %s96, 1
      %s98 = scalar_select %p95, %s96, %s97
      %p101 = pneg %p95
      %p102 = scmp.eq.s32.totalorder %s16, 1
      %p103 = por %p101, %p102
      %p104 = scmp.ne.s32.totalorder %s96, %s99
      %p105 = scmp.eq.s32.totalorder %s16, 0
      %p106 = por %p104, %p105
      %p107 = scmp.ne.s32.totalorder %s96, %s99
      %p108 = scmp.eq.s32.totalorder %s21, 1
      %p109 = por %p107, %p108
      %p110 = scmp.ne.s32.totalorder %s99, %s100
      %p111 = scmp.eq.s32.totalorder %s21, 0
      %p112 = por %p110, %p111
      %p113 = scmp.ne.s32.totalorder %s99, %s100
      %p114 = scmp.eq.s32.totalorder %s22, 1
      %p115 = por %p113, %p114
      %p117 = scmp.ne.s32.totalorder %s100, %s116
      %p118 = scmp.eq.s32.totalorder %s22, 0
      %p119 = por %p117, %p118
      %s120 = ssub.s32 %s23, %s35
      %s121 = ssub.s32 %s24, %s31
      %s122 = sor.u32 %s120, %s121
      %p123 = scmp.eq.s32.totalorder %s122, 0
      %s125 = sadd.s32 %s124, 1
      %s126 = scalar_select %p123, %s124, %s125
      %p129 = pneg %p123
      %p130 = scmp.eq.s32.totalorder %s16, 1
      %p131 = por %p129, %p130
      %p132 = scmp.ne.s32.totalorder %s124, %s127
      %p133 = scmp.eq.s32.totalorder %s16, 0
      %p134 = por %p132, %p133
      %p135 = scmp.ne.s32.totalorder %s124, %s127
      %p136 = scmp.eq.s32.totalorder %s21, 1
      %p137 = por %p135, %p136
      %p138 = scmp.ne.s32.totalorder %s127, %s128
      %p139 = scmp.eq.s32.totalorder %s21, 0
      %p140 = por %p138, %p139
      %p141 = scmp.ne.s32.totalorder %s127, %s128
      %p142 = scmp.eq.s32.totalorder %s22, 1
      %p143 = por %p141, %p142
      %p145 = scmp.ne.s32.totalorder %s128, %s144
      %p146 = scmp.eq.s32.totalorder %s22, 0
      %p147 = por %p145, %p146
      %s149 = sadd.s32 %s148, 1
      %p152 = scmp.eq.s32.totalorder %s16, 1
      %p153 = scmp.ne.s32.totalorder %s148, %s150
      %p154 = scmp.eq.s32.totalorder %s16, 0
      %p155 = por %p153, %p154
      %p156 = scmp.ne.s32.totalorder %s148, %s150
      %p157 = scmp.eq.s32.totalorder %s21, 1
      %p158 = por %p156, %p157
      %p159 = scmp.ne.s32.totalorder %s150, %s151
      %p160 = scmp.eq.s32.totalorder %s21, 0
      %p161 = por %p159, %p160
      %p162 = scmp.ne.s32.totalorder %s150, %s151
      %p163 = scmp.eq.s32.totalorder %s22, 1
      %p164 = por %p162, %p163
      %p166 = scmp.ne.s32.totalorder %s151, %s165
      %p167 = scmp.eq.s32.totalorder %s22, 0
      %p168 = por %p166, %p167
      %s170 = sadd.s32 %s169, 1
      %p173 = scmp.eq.s32.totalorder %s16, 1
      %p174 = scmp.ne.s32.totalorder %s169, %s171
      %p175 = scmp.eq.s32.totalorder %s16, 0
      %p176 = por %p174, %p175
      %p177 = scmp.ne.s32.totalorder %s169, %s171
      %p178 = scmp.eq.s32.totalorder %s21, 1
      %p179 = por %p177, %p178
      %p180 = scmp.ne.s32.totalorder %s171, %s172
      %p181 = scmp.eq.s32.totalorder %s21, 0
      %p182 = por %p180, %p181
      %p183 = scmp.ne.s32.totalorder %s171, %s172
      %p184 = scmp.eq.s32.totalorder %s22, 1
      %p185 = por %p183, %p184
      %p187 = scmp.ne.s32.totalorder %s172, %s186
      %p188 = scmp.eq.s32.totalorder %s22, 0
      %p189 = por %p187, %p188
      %s191 = sadd.s32 %s190, 1
      %p194 = scmp.eq.s32.totalorder %s16, 1
      %p195 = scmp.ne.s32.totalorder %s190, %s192
      %p196 = scmp.eq.s32.totalorder %s16, 0
      %p197 = por %p195, %p196
      %p198 = scmp.ne.s32.totalorder %s190, %s192
      %p199 = scmp.eq.s32.totalorder %s21, 1
      %p200 = por %p198, %p199
      %p201 = scmp.ne.s32.totalorder %s192, %s193
      %p202 = scmp.eq.s32.totalorder %s21, 0
      %p203 = por %p201, %p202
      %p204 = scmp.ne.s32.totalorder %s192, %s193
      %p205 = scmp.eq.s32.totalorder %s22, 1
      %p206 = por %p204, %p205
      %p208 = scmp.ne.s32.totalorder %s193, %s207
      %p209 = scmp.eq.s32.totalorder %s22, 0
      %p210 = por %p208, %p209
      %s211 = ssub.s32 %s23, %s35
      %p212 = scmp.eq.s32.totalorder %s211, 0
      %s214 = sadd.s32 %s213, 1
      %s215 = scalar_select %p212, %s213, %s214
      %p218 = pneg %p212
      %p219 = scmp.eq.s32.totalorder %s16, 1
      %p220 = por %p218, %p219
      %p221 = scmp.ne.s32.totalorder %s213, %s216
      %p222 = scmp.eq.s32.totalorder %s16, 0
      %p223 = por %p221, %p222
      %p224 = scmp.ne.s32.totalorder %s213, %s216
      %p225 = scmp.eq.s32.totalorder %s21, 1
      %p226 = por %p224, %p225
      %p227 = scmp.ne.s32.totalorder %s216, %s217
      %p228 = scmp.eq.s32.totalorder %s21, 0
      %p229 = por %p227, %p228
      %p230 = scmp.ne.s32.totalorder %s216, %s217
      %p231 = scmp.eq.s32.totalorder %s22, 1
      %p232 = por %p230, %p231
      %p234 = scmp.ne.s32.totalorder %s217, %s233
      %p235 = scmp.eq.s32.totalorder %s22, 0
      %p236 = por %p234, %p235
      %p237 = scmp.le.s32.totalorder 1, %s16
      %p238 = scmp.lt.s32.totalorder %s16, 3
      %p239 = pnand %p237, %p238
      %p240 = pneg %p239
      // Predicated region
      $region9: #{message_passing_forward.1} parent=5 // pred_check
        _
      $region10: #{message_passing_forward.1} parent=5 // pred_check_branch
        %242 = sbr.rel (%p239) target = $region12
      $region11: #{message_passing_forward.1} parent=5 // pred_region
        %s243 = ssub.s32 %s16, 1
        // Predicated region
        $region13: #{message_passing_forward.1} parent=11 // pred_check
          %p244 = pneg %p161
        $region14: #{message_passing_forward.1} parent=11 // pred_check_branch
          %246 = sbr.rel (%p244) target = $region16
        $region15: #{message_passing_forward.1} parent=11 // pred_region
          _
        $region16: #{message_passing_forward.1} parent=11 // pred_fallthru
          _
        // Predicated region
        $region17: #{message_passing_forward.1} parent=11 // pred_check
          %p247 = pneg %p182
        $region18: #{message_passing_forward.1} parent=11 // pred_check_branch
          %249 = sbr.rel (%p247) target = $region20
        $region19: #{message_passing_forward.1} parent=11 // pred_region
          _
        $region20: #{message_passing_forward.1} parent=11 // pred_fallthru
          _
        // Predicated region
        $region21: #{message_passing_forward.1} parent=11 // pred_check
          %p250 = pneg %p203
        $region22: #{message_passing_forward.1} parent=11 // pred_check_branch
          %252 = sbr.rel (%p250) target = $region24
        $region23: #{message_passing_forward.1} parent=11 // pred_region
          _
        $region24: #{message_passing_forward.1} parent=11 // pred_fallthru
          _
      $region12: #{message_passing_forward.1} parent=5 // pred_fallthru
        _
      %p253 = scmp.lt.s32.totalorder %s16, 2
      // Predicated region
      $region25: #{message_passing_forward.1} parent=5 // pred_check
        %p254 = pneg %p253
      $region26: #{message_passing_forward.1} parent=5 // pred_check_branch
        %256 = sbr.rel (%p254) target = $region28
      $region27: #{message_passing_forward.1} parent=5 // pred_region
        // Predicated region
        $region29: #{message_passing_forward.1} parent=27 // pred_check
          %p257 = pneg %p50
        $region30: #{message_passing_forward.1} parent=27 // pred_check_branch
          %259 = sbr.rel (%p257) target = $region32
        $region31: #{message_passing_forward.1} parent=27 // pred_region
          %p260 = scmp.lt.s32.totalorder %s23, 1
          %s261 = scalar_select %p260, %s23, 1
          %p262 = scmp.lt.s32.totalorder %s24, 0
          %s263 = scalar_select %p262, %s24, 0
          %s264 = sadd.s32 %s263, %s261
          %s265 = smul.addr %s264, 8
          %s266 = scalar_lea.vmem %s0, %s265
        $region32: #{message_passing_forward.1} parent=27 // pred_fallthru
          _
        // Predicated region
        $region33: #{message_passing_forward.1} parent=27 // pred_check
          %p267 = pneg %p78
        $region34: #{message_passing_forward.1} parent=27 // pred_check_branch
          %269 = sbr.rel (%p267) target = $region36
        $region35: #{message_passing_forward.1} parent=27 // pred_region
          %p270 = scmp.lt.s32.totalorder %s23, 1
          %s271 = scalar_select %p270, %s23, 1
          %p272 = scmp.lt.s32.totalorder %s24, 0
          %s273 = scalar_select %p272, %s24, 0
          %s274 = sadd.s32 %s273, %s271
          %s275 = smul.addr %s274, 8
          %s276 = scalar_lea.vmem %s1, %s275
        $region36: #{message_passing_forward.1} parent=27 // pred_fallthru
          _
        // Predicated region
        $region37: #{message_passing_forward.1} parent=27 // pred_check
          %p277 = pneg %p106
        $region38: #{message_passing_forward.1} parent=27 // pred_check_branch
          %279 = sbr.rel (%p277) target = $region40
        $region39: #{message_passing_forward.1} parent=27 // pred_region
          %p280 = scmp.lt.s32.totalorder %s23, 1
          %s281 = scalar_select %p280, %s23, 1
          %p282 = scmp.lt.s32.totalorder %s24, 0
          %s283 = scalar_select %p282, %s24, 0
          %s284 = sadd.s32 %s283, %s281
          %s285 = smul.addr %s284, 8
          %s286 = scalar_lea.vmem %s2, %s285
        $region40: #{message_passing_forward.1} parent=27 // pred_fallthru
          _
        // Predicated region
        $region41: #{message_passing_forward.1} parent=27 // pred_check
          %p287 = pneg %p134
        $region42: #{message_passing_forward.1} parent=27 // pred_check_branch
          %289 = sbr.rel (%p287) target = $region44
        $region43: #{message_passing_forward.1} parent=27 // pred_region
          %p290 = scmp.lt.s32.totalorder %s23, 1
          %s291 = scalar_select %p290, %s23, 1
          %p292 = scmp.lt.s32.totalorder %s24, 0
          %s293 = scalar_select %p292, %s24, 0
          %s294 = sadd.s32 %s293, %s291
          %s295 = smul.addr %s294, 8
          %s296 = scalar_lea.vmem %s3, %s295
        $region44: #{message_passing_forward.1} parent=27 // pred_fallthru
          _
      $region28: #{message_passing_forward.1} parent=5 // pred_fallthru
        _
      %p297 = scmp.le.s32.totalorder 1, %s16
      %p298 = scmp.lt.s32.totalorder %s16, 3
      %p299 = pnand %p297, %p298
      %p300 = pneg %p299
      // Predicated region
      $region45: #{message_passing_forward.1} parent=5 // pred_check
        _
      $region46: #{message_passing_forward.1} parent=5 // pred_check_branch
        %302 = sbr.rel (%p299) target = $region48
      $region47: #{message_passing_forward.1} parent=5 // pred_region
        %s303 = ssub.s32 %s16, 1
        %p304 = scmp.lt.s32.totalorder %s25, 1
        %s305 = scalar_select %p304, %s25, 1
        %p306 = scmp.lt.s32.totalorder %s26, 0
        %s307 = scalar_select %p306, %s26, 0
        %s308 = sadd.s32 %s307, %s305
        %s309 = smul.addr %s308, 8
        %s310 = scalar_lea.vmem %s0, %s309
        %p311 = pneg %p56
        %p312 = pneg %p53
        %p313 = scmp.lt.s32.totalorder %s25, 1
        %s314 = scalar_select %p313, %s25, 1
        %p315 = scmp.lt.s32.totalorder %s26, 0
        %s316 = scalar_select %p315, %s26, 0
        %s317 = sadd.s32 %s316, %s314
        %s318 = smul.addr %s317, 8
        %s319 = scalar_lea.vmem %s1, %s318
        %p320 = pneg %p84
        %p321 = pneg %p81
        %p322 = scmp.lt.s32.totalorder %s25, 1
        %s323 = scalar_select %p322, %s25, 1
        %p324 = scmp.lt.s32.totalorder %s26, 0
        %s325 = scalar_select %p324, %s26, 0
        %s326 = sadd.s32 %s325, %s323
        %s327 = smul.addr %s326, 8
        %s328 = scalar_lea.vmem %s2, %s327
        %p329 = pneg %p112
        %p330 = pneg %p109
        %p331 = scmp.lt.s32.totalorder %s25, 1
        %s332 = scalar_select %p331, %s25, 1
        %p333 = scmp.lt.s32.totalorder %s26, 0
        %s334 = scalar_select %p333, %s26, 0
        %s335 = sadd.s32 %s334, %s332
        %s336 = smul.addr %s335, 8
        %s337 = scalar_lea.vmem %s3, %s336
        %p338 = pneg %p140
        %p339 = pneg %p137
        %p340 = pneg %p161
        %p341 = pneg %p158
        %p342 = pneg %p182
        %p343 = pneg %p179
        %p344 = pneg %p203
        %p345 = pneg %p200
        %p346 = pneg %p229
        %p347 = pneg %p226
        %s348 = sand.u32 %s216, 1
        %s349 = scalar_lea.sflag [#allocation4], %s348
        %s350 = sand.u32 %s216, 1
        %s351 = scalar_lea.vmem [#allocation3], %s350
        %p352 = scmp.lt.s32.totalorder %s25, 1
        %s353 = scalar_select %p352, %s25, 1
        %p354 = scmp.lt.s32.totalorder %s26, 0
        %s355 = scalar_select %p354, %s26, 0
        %s356 = sadd.s32 %s355, %s353
        %s357 = smul.addr %s356, 8
        %s358 = scalar_lea.vmem %s0, %s357
        %p359 = scmp.lt.s32.totalorder %s25, 1
        %s360 = scalar_select %p359, %s25, 1
        %p361 = scmp.lt.s32.totalorder %s26, 0
        %s362 = scalar_select %p361, %s26, 0
        %s363 = sadd.s32 %s362, %s360
        %s364 = smul.addr %s363, 8
        %s365 = scalar_lea.vmem %s1, %s364
        %p366 = scmp.lt.s32.totalorder %s25, 1
        %s367 = scalar_select %p366, %s25, 1
        %p368 = scmp.lt.s32.totalorder %s26, 0
        %s369 = scalar_select %p368, %s26, 0
        %s370 = sadd.s32 %s369, %s367
        %s371 = smul.addr %s370, 8
        %s372 = scalar_lea.vmem %s2, %s371
        %p373 = scmp.lt.s32.totalorder %s25, 1
        %s374 = scalar_select %p373, %s25, 1
        %p375 = scmp.lt.s32.totalorder %s26, 0
        %s376 = scalar_select %p375, %s26, 0
        %s377 = sadd.s32 %s376, %s374
        %s378 = smul.addr %s377, 8
        %s379 = scalar_lea.vmem %s3, %s378
        %p380 = scmp.eq.s32.totalorder %s26, 0
        // Predicated region
        $region49: #{message_passing_forward.1} parent=47 // pred_check
          %p381 = pneg %p380
        $region50: #{message_passing_forward.1} parent=47 // pred_check_branch
          %383 = sbr.rel (%p381) target = $region52
        $region51: #{message_passing_forward.1} parent=47 // pred_region
          %vm384 = vcmask 261120
          %385 = vst.msk [vmem:[#allocation2] sm:$0xff] %vm384, 0.0
        $region52: #{message_passing_forward.1} parent=47 // pred_fallthru
          _
        %v386 = vld [vmem:[%s358] sm:$0xff]
        %v387 = vld [vmem:[%s4] sm:$0xff]
        %vm388 = vcmask 64512
        %v390 = vsel %vm388, %v386, 0
        %392 = vmatpush.msra.mxu0 0.0
        %393 = vmatpush.msra.mxu0 0.0
        %394 = vmatpush.msra.mxu0 0.0
        %395 = vmatpush.msra.mxu0 0.0
        %396 = vmatpush.msra.mxu0 0.0
        %397 = vmatpush.msra.mxu0 0.0
        %398 = vmatpush.msra.mxu0 0.0
        %399 = vmatpush.msra.mxu0 0.0
        %400 = vmatpush.msra.mxu0 0.0
        %401 = vmatpush.msra.mxu0 0.0
        %402 = vmatpush.msra.mxu0 0.0
        %403 = vmatpush.msra.mxu0 0.0
        %404 = vmatpush.msra.mxu0 0.0
        %405 = vmatpush.msra.mxu0 0.0
        %406 = vmatpush.msra.mxu0 0.0
        %407 = vmatpush.msra.mxu0 %v387
        %408 = vmatmul.f32.gmra.mxu0 %v390
        %v409 = vpop.f32.mrf.mxu0
        %v410 = vadd.f32 0.0, %v409
        %411 = vdwg.mxu0
        %vm412 = vcmp.eq.f32.partialorder %v386, 0.0
        %v413 = vsel %vm412, -1e+18, 0.0
        %v415 = vsel %vm388, %v413, 0
        %417 = vmatpush.msra.mxu0 0.0
        %418 = vmatpush.msra.mxu0 0.0
        %419 = vmatpush.msra.mxu0 0.0
        %420 = vmatpush.msra.mxu0 0.0
        %421 = vmatpush.msra.mxu0 0.0
        %422 = vmatpush.msra.mxu0 0.0
        %423 = vmatpush.msra.mxu0 0.0
        %424 = vmatpush.msra.mxu0 0.0
        %425 = vmatpush.msra.mxu0 0.0
        %426 = vmatpush.msra.mxu0 0.0
        %427 = vmatpush.msra.mxu0 0.0
        %428 = vmatpush.msra.mxu0 0.0
        %429 = vmatpush.msra.mxu0 0.0
        %430 = vmatpush.msra.mxu0 0.0
        %431 = vmatpush.msra.mxu0 0.0
        %432 = vmatpush.msra.mxu0 %v387
        %433 = vmatmul.f32.gmra.mxu0 %v415
        %v434 = vpop.f32.mrf.mxu0
        %v435 = vadd.f32 0.0, %v434
        %436 = vdwg.mxu0
        %v437 = vld [vmem:[%s365] sm:$0xff]
        %v438 = vmul.f32 %v410, %v437
        %v439 = vadd.f32 %v438, %v435
        %440 = vrot.lane.b32.xlu0 %v439, 32
        %v441 = vpop.permute.xlu0 %440
        %v442 = vmax.f32 %v439, %v441
        %443 = vrot.lane.b32.xlu0 %v442, 64
        %v444 = vpop.permute.xlu0 %443
        %v445 = vmax.f32 %v442, %v444
        %v446 = vld [vmem:[%s379] sm:$0xff]
        %v447 = vsub.f32 1.0, %v446
        %449 = vset.pattern.permute.xlu0 0
        %450 = vperm.xlu0 %449, %v447
        %v451 = vpop.permute.xlu0 %450
        %v453 = vmul.f32 %v451, %v445
        %v454 = vld [vmem:[%s372] sm:$0xff]
        %456 = vset.pattern.permute.xlu0 0
        %457 = vperm.xlu0 %456, %v446
        %v458 = vpop.permute.xlu0 %457
        %v460 = vmul.f32 %v458, %v454
        %v461 = vadd.f32 %v453, %v460
        %v462 = vld [vmem:[#allocation2] sm:$0xff]
        %v463 = vadd.f32 %v462, %v461
        %vm464 = vcmask 261120
        %465 = vst.msk [vmem:[#allocation2] sm:$0xff] %vm464, %v463
        // Predicated region
        $region53: #{message_passing_forward.1} parent=47 // pred_check
          %p466 = pneg %p380
        $region54: #{message_passing_forward.1} parent=47 // pred_check_branch
          %468 = sbr.rel (%p466) target = $region56
        $region55: #{message_passing_forward.1} parent=47 // pred_region
          %v469 = vld [vmem:[#allocation2] sm:$0xff]
          %v470 = vld [vmem:[%s5] sm:$0xff]
          %v471 = vld [vmem:[%s5 + $0x8] sm:$0xff]
          %v472 = vld [vmem:[%s5 + $0x10] sm:$0xff]
          %v473 = vld [vmem:[%s5 + $0x18] sm:$0xff]
          %v475 = vsel %vm464, %v469, 0
          %477 = vmatpush.msra.mxu0 0.0
          %478 = vmatpush.msra.mxu0 0.0
          %479 = vmatpush.msra.mxu0 0.0
          %480 = vmatpush.msra.mxu0 0.0
          %481 = vmatpush.msra.mxu0 0.0
          %482 = vmatpush.msra.mxu0 0.0
          %483 = vmatpush.msra.mxu0 0.0
          %484 = vmatpush.msra.mxu0 0.0
          %485 = vmatpush.msra.mxu0 0.0
          %486 = vmatpush.msra.mxu0 0.0
          %487 = vmatpush.msra.mxu0 0.0
          %488 = vmatpush.msra.mxu0 0.0
          %489 = vmatpush.msra.mxu0 %v473
          %490 = vmatpush.msra.mxu0 %v472
          %491 = vmatpush.msra.mxu0 %v471
          %492 = vmatpush.msra.mxu0 %v470
          %493 = vmatmul.f32.gmra.mxu0 %v475
          %v494 = vpop.f32.mrf.mxu0
          %v495 = vadd.f32 0.0, %v494
          %496 = vdwg.mxu0
          %vm497 = vcmask 130048
          %v498 = vsel %vm497, %v495, 0.0
          %v499 = vrot.slane %v498, 4
          %v500 = vadd.f32 %v498, %v499
          %v501 = vrot.slane %v500, 2
          %v502 = vadd.f32 %v500, %v501
          %v503 = vrot.slane %v502, 1
          %v504 = vadd.f32 %v502, %v503
          %v505 = vld [vmem:[%s6] sm:$0x1]
          %v506 = vadd.f32 %v504, %v505
          %v507 = vmax.f32 %v506, 0.0
          %vm508 = vcmask 122880
          %v509 = vsel %vm508, %v507, -inf
          %510 = vmax.xlane.f32.xlu0 %v509
          %v511 = vpop.xlane.xlu0 %510
          %v512 = vsub.f32 %v507, %v511
          %v513 = vmul.f32 %v512, 1.442695
          %v514 = vpow.pop %v513
          %v515 = vsel %vm508, %v514, 0.0
          %516 = vadd.xlane.f32.xlu0 %v515
          %v517 = vpop.xlane.xlu0 %516
          %v518 = vrcp.pop %v517
          %v519 = vmul.f32 %v517, %v518
          %v520 = vsub.f32 1.0, %v519
          %v521 = vmul.f32 %v518, %v520
          %v522 = vadd.f32 %v518, %v521
          %vm523 = vweird.f32 %v517
          %vm524 = vweird.f32 %v518
          %vm525 = vmor %vm523, %vm524
          %v526 = vsel %vm525, %v518, %v522
          %v527 = vand.u32 2147483647, %v517
          %vm528 = vcmp.eq.f32.partialorder %v527, 8.507059e+37
          %v529 = vand.u32 %v517, 2147483648
          %v530 = vor.u32 1.1754944e-38, %v529
          %v531 = vsel %vm528, %v530, %v526
          %v532 = vmul.f32 %v514, %v531
          %533 = vst.msk [vmem:[%s351] sm:$0x1] %vm508, %v532
        $region56: #{message_passing_forward.1} parent=47 // pred_fallthru
          _
        %s534 = sand.u32 %s216, 1
        %s535 = scalar_lea.sflag [#allocation4], %s534
        %s536 = sand.u32 %s216, 1
        %s537 = scalar_lea.vmem [#allocation3], %s536
        // Predicated region
        $region57: #{message_passing_forward.1} parent=47 // pred_check
          %p538 = pneg %p226
        $region58: #{message_passing_forward.1} parent=47 // pred_check_branch
          %540 = sbr.rel (%p538) target = $region60
        $region59: #{message_passing_forward.1} parent=47 // pred_region
          %542 = vsyncadd %s535, 0
          %s543 = scalar_lea.hbm %s7, %s25
          %s545 = sshll.u32 %s537, 4
          %s546 = int_to_ptr.vmem [resolvable:$true] %s545
          %s547 = sshll.u32 %s543, 4
          %s548 = int_to_ptr.hbm [resolvable:$true] %s547
          %550 = dma.vmem_to_hbm [thread:$0]  %s546, 16, %s548, %s535
        $region60: #{message_passing_forward.1} parent=47 // pred_fallthru
          _
      $region48: #{message_passing_forward.1} parent=5 // pred_fallthru
        _
      %p551 = scmp.le.s32.totalorder 2, %s16
      // Predicated region
      $region61: #{message_passing_forward.1} parent=5 // pred_check
        %p552 = pneg %p551
      $region62: #{message_passing_forward.1} parent=5 // pred_check_branch
        %554 = sbr.rel (%p552) target = $region64
      $region63: #{message_passing_forward.1} parent=5 // pred_region
        %s555 = ssub.s32 %s16, 2
        // Predicated region
        $region65: #{message_passing_forward.1} parent=63 // pred_check
          %p556 = pneg %p232
        $region66: #{message_passing_forward.1} parent=63 // pred_check_branch
          %558 = sbr.rel (%p556) target = $region68
        $region67: #{message_passing_forward.1} parent=63 // pred_region
          %s559 = sand.u32 %s217, 1
          %s560 = scalar_lea.sflag [#allocation4], %s559
          %s561 = sand.u32 %s217, 1
          %s562 = scalar_lea.vmem [#allocation3], %s561
          %564 = dma.done %s560, 16
        $region68: #{message_passing_forward.1} parent=63 // pred_fallthru
          _
      $region64: #{message_passing_forward.1} parent=5 // pred_fallthru
        _
    $region6: #{message_passing_forward.1} parent=1 // loop_footer
      %s20 = sadd.s32 1, %s16
    $region7: #{message_passing_forward.1} parent=1 // loop_footer_branch
      %15 = sbr.rel target = $region3
    $region8: #{message_passing_forward.1} parent=1 // loop_exit
      _
    %565 = vsyncpa [#allocation4], 1
    %s566 = scalar_lea.sflag [#allocation4], 1
    %567 = vsyncpa %s566, 1

</llo_original>
